<compile_context>
chip_gen: v6e
topology: v6e:2x2x1
jax: 0.10.0
libtpu: 0.0.40
codegen_flags: <defaults>
</compile_context>

<pallas_src>
import functools
import math

import jax
import jax.numpy as jnp
from jax.experimental import pallas as pl
from jax.experimental.pallas import tpu as pltpu

COMPUTE_DTYPE = jnp.bfloat16   # MXU-native; f32 accumulation everywhere.


# ----------------------------- helpers -------------------------------------

def _row_tile(n):
    """Largest bf16-sublane-aligned row tile dividing n while keeping >= 2 grid
    steps (so v7x's second TensorCore gets work); else a single full block."""
    for t in (512, 256, 128, 64, 32, 16):
        if n % t == 0 and n // t >= 2:
            return t
    return n


def build_rope_cache(seq_len, n_elem, base=10000.0):
    # matches ChatGLM2 RotaryEmbedding.forward_impl: [S, n_elem//2, 2]
    theta = 1.0 / (base ** (jnp.arange(0, n_elem, 2, dtype=jnp.float32) / n_elem))
    seq_idx = jnp.arange(seq_len, dtype=jnp.float32)
    idx_theta = jnp.outer(seq_idx, theta)
    return jnp.stack([jnp.cos(idx_theta), jnp.sin(idx_theta)], axis=-1)


def _rope_tables(rope_cache, head_dim, n_heads):
    """Full-width [3, sq, n_heads*head_dim] tables (cos, -sin@even, +sin@odd).

    The interleaved-pair rotation then becomes
        out = x*cos + shift_left(x)*tbl[1] + shift_right(x)*tbl[2]
    with pass-through lanes (cos=1, sin=0) untouched.
    """
    sq = rope_cache.shape[0]
    rot = rope_cache.shape[1] * 2                       # rotated dims per head
    cos = rope_cache[..., 0]                            # (sq, rot/2)
    sin = rope_cache[..., 1]
    cos_il = jnp.repeat(cos, 2, axis=-1)                # (sq, rot)
    sin_il = jnp.repeat(sin, 2, axis=-1)
    even = (jnp.arange(rot) % 2) == 0
    sa_rot = jnp.where(even, -sin_il, 0.0)              # multiplies x[i+1]
    sb_rot = jnp.where(even, 0.0, sin_il)               # multiplies x[i-1]
    pad = head_dim - rot
    cos_h = jnp.concatenate([cos_il, jnp.ones((sq, pad), jnp.float32)], axis=-1)
    sa_h = jnp.concatenate([sa_rot, jnp.zeros((sq, pad), jnp.float32)], axis=-1)
    sb_h = jnp.concatenate([sb_rot, jnp.zeros((sq, pad), jnp.float32)], axis=-1)
    cos_f = jnp.tile(cos_h, (1, n_heads))
    sa_f = jnp.tile(sa_h, (1, n_heads))
    sb_f = jnp.tile(sb_h, (1, n_heads))
    return jnp.stack([cos_f, sa_f, sb_f], axis=0).astype(jnp.float32)


# ------------- Kernel 1: RMSNorm + QKV projection + bias + RoPE -------------

def _apply_rope(x, r_ref):
    # x: (sq, w) f32; r_ref: (3, sq, w) f32 = [cos, -sin@even, +sin@odd]
    # TODO(synk): switch the neighbour shifts to pltpu.roll (XLU) at production widths.
    cos = r_ref[0]
    sa = r_ref[1]
    sb = r_ref[2]
    left = jnp.concatenate([x[:, 1:], x[:, :1]], axis=-1)    # left[i]  = x[i+1]
    right = jnp.concatenate([x[:, -1:], x[:, :-1]], axis=-1)  # right[i] = x[i-1]
    return x * cos + left * sa + right * sb


def _norm_qkv_rope_kernel(x_ref, lnw_ref, wq_ref, bq_ref, wk_ref, bk_ref,
                          wv_ref, bv_ref, rq_ref, rk_ref,
                          q_ref, k_ref, v_ref, *, eps):
    x = x_ref[0].astype(jnp.float32)                          # (sq, h)
    var = jnp.mean(x * x, axis=-1, keepdims=True)
    xn = (x * jax.lax.rsqrt(var + eps) * lnw_ref[...]).astype(jnp.bfloat16)

    def proj(w_ref, b_ref):
        return jnp.dot(xn, w_ref[...],
                       preferred_element_type=jnp.float32) + b_ref[...]

    q = _apply_rope(proj(wq_ref, bq_ref), rq_ref)
    k = _apply_rope(proj(wk_ref, bk_ref), rk_ref)
    v = proj(wv_ref, bv_ref)

    q_ref[0] = q.astype(q_ref.dtype)
    k_ref[0] = k.astype(k_ref.dtype)
    v_ref[0] = v.astype(v_ref.dtype)


def fused_norm_qkv_rope(x_bsh, ln_w, wq, bq, wk, bk, wv, bv, rope_q, rope_k, eps):
    b, s, h = x_bsh.shape
    gd = wk.shape[1]
    qkv_out = h + 2 * gd
    n = b * s
    flops = 2 * n * h * qkv_out + 10 * n * qkv_out + 4 * n * h
    bytes_accessed = int(2 * (n * h + h * qkv_out + n * qkv_out)
                         + 4 * (qkv_out + h + 3 * s * (h + gd)))
    # TODO(synk): at production sizes tile the weight N/K dims with a VMEM f32
    # accumulator and mark invariant weight specs pipeline_mode=pl.Buffered(1).
    return pl.pallas_call(
        functools.partial(_norm_qkv_rope_kernel, eps=eps),
        out_shape=(jax.ShapeDtypeStruct((b, s, h), x_bsh.dtype),
                   jax.ShapeDtypeStruct((b, s, gd), x_bsh.dtype),
                   jax.ShapeDtypeStruct((b, s, gd), x_bsh.dtype)),
        grid=(b,),
        in_specs=[
            pl.BlockSpec((1, s, h), lambda i: (i, 0, 0)),
            pl.BlockSpec((1, h), lambda i: (0, 0)),
            pl.BlockSpec((h, h), lambda i: (0, 0)),
            pl.BlockSpec((1, h), lambda i: (0, 0)),
            pl.BlockSpec((h, gd), lambda i: (0, 0)),
            pl.BlockSpec((1, gd), lambda i: (0, 0)),
            pl.BlockSpec((h, gd), lambda i: (0, 0)),
            pl.BlockSpec((1, gd), lambda i: (0, 0)),
            pl.BlockSpec((3, s, h), lambda i: (0, 0, 0)),
            pl.BlockSpec((3, s, gd), lambda i: (0, 0, 0)),
        ],
        out_specs=(pl.BlockSpec((1, s, h), lambda i: (i, 0, 0)),
                   pl.BlockSpec((1, s, gd), lambda i: (i, 0, 0)),
                   pl.BlockSpec((1, s, gd), lambda i: (i, 0, 0))),
        compiler_params=pltpu.CompilerParams(dimension_semantics=("parallel",)),
        cost_estimate=pl.CostEstimate(flops=flops, transcendentals=n,
                                      bytes_accessed=bytes_accessed),
    )(x_bsh, ln_w, wq, bq, wk, bk, wv, bv, rope_q, rope_k)


# -------------------------- Kernel 2: attention -----------------------------

def _attn_kernel(q_ref, k_ref, v_ref, o_ref, *, nh, g, hd, scale):
    sq = q_ref.shape[1]
    sk = k_ref.shape[1]
    rep = nh // g
    q = q_ref[0]                                              # (sq, nh*hd) bf16
    k = k_ref[0]                                              # (sk, g*hd)  bf16
    v = v_ref[0]
    # causal mask on the VPU; offset handles kv-cache decode (sk >= sq)
    row = jax.lax.broadcasted_iota(jnp.int32, (sq, sk), 0)
    col = jax.lax.broadcasted_iota(jnp.int32, (sq, sk), 1)
    mask = col > row + (sk - sq)
    # Per-head static loop (nh is tiny here); each K/V group is read once per
    # batch step and never repeated.  Output is assembled lane-dense (sq, h).
    # TODO(synk): flash kv tiling + folded-head lane layout at production sizes.
    outs = []
    for h_i in range(nh):
        gi = h_i // rep
        qh = q[:, h_i * hd:(h_i + 1) * hd]
        kh = k[:, gi * hd:(gi + 1) * hd]
        vh = v[:, gi * hd:(gi + 1) * hd]
        s = jax.lax.dot_general(qh, kh, (((1,), (1,)), ((), ())),
                                preferred_element_type=jnp.float32) * scale
        s = jnp.where(mask, -1e9, s)
        m = jnp.max(s, axis=-1, keepdims=True)
        p = jnp.exp(s - m)
        denom = jnp.sum(p, axis=-1, keepdims=True)
        p = p * pl.reciprocal(denom, approx=True)
        outs.append(jnp.dot(p.astype(v.dtype), vh,
                            preferred_element_type=jnp.float32))
    ctx = jnp.concatenate(outs, axis=-1)                      # (sq, nh*hd)
    o_ref[0] = ctx.astype(o_ref.dtype)


def attention(q_bsh, k_bsd, v_bsd, nh, g, hd, scale):
    # q: [b, sq, nh*hd]; k, v: [b, sk, g*hd]  (GQA, never repeated in HBM)
    b, sq, h = q_bsh.shape
    sk, gd = k_bsd.shape[1], k_bsd.shape[2]
    flops = 4 * b * nh * sq * sk * hd
    bytes_accessed = int(2 * (2 * b * sq * h + 2 * b * sk * gd))
    return pl.pallas_call(
        functools.partial(_attn_kernel, nh=nh, g=g, hd=hd, scale=scale),
        out_shape=jax.ShapeDtypeStruct((b, sq, h), q_bsh.dtype),
        grid=(b,),
        in_specs=[
            pl.BlockSpec((1, sq, h), lambda i: (i, 0, 0)),
            pl.BlockSpec((1, sk, gd), lambda i: (i, 0, 0)),
            pl.BlockSpec((1, sk, gd), lambda i: (i, 0, 0)),
        ],
        out_specs=pl.BlockSpec((1, sq, h), lambda i: (i, 0, 0)),
        compiler_params=pltpu.CompilerParams(dimension_semantics=("parallel",)),
        cost_estimate=pl.CostEstimate(flops=flops,
                                      transcendentals=b * nh * sq * sk,
                                      bytes_accessed=bytes_accessed),
    )(q_bsh, k_bsd, v_bsd)


# --- Kernel 3: out-proj + residual + post-RMSNorm + SwiGLU MLP + residual ---

def _post_attn_kernel(ctx_ref, res_ref, wo_ref, ln2_ref, wg_ref, wu_ref, w2_ref,
                      o_ref, *, eps):
    ctx = ctx_ref[...]                                        # (tm, h) bf16
    attn_out = jnp.dot(ctx, wo_ref[...],
                       preferred_element_type=jnp.float32)    # dense, no bias
    # residual #1 (apply_residual_connection_post_layernorm=False,
    # hidden_dropout=0.0 / eval -> identity)
    ln_in = res_ref[...].astype(jnp.float32) + attn_out
    var = jnp.mean(ln_in * ln_in, axis=-1, keepdims=True)
    xn = (ln_in * jax.lax.rsqrt(var + eps) * ln2_ref[...]).astype(jnp.bfloat16)
    gate = jnp.dot(xn, wg_ref[...], preferred_element_type=jnp.float32)
    up = jnp.dot(xn, wu_ref[...], preferred_element_type=jnp.float32)
    act = (gate * jax.nn.sigmoid(gate) * up).astype(jnp.bfloat16)
    mlp_out = jnp.dot(act, w2_ref[...], preferred_element_type=jnp.float32)
    o_ref[...] = (ln_in + mlp_out).astype(o_ref.dtype)        # residual #2


def fused_post_attn(ctx2d, resid2d, wo, ln2_w, w_gate, w_up, w2, eps):
    n, h = ctx2d.shape
    ffn = w_gate.shape[1]
    tm = _row_tile(n)
    flops = 2 * n * h * h + 4 * n * h * ffn + 2 * n * ffn * h + 10 * n * h
    bytes_accessed = int(2 * (3 * n * h + h * h + 2 * h * ffn + ffn * h) + 4 * h)
    # TODO(synk): tile ffn/h weight dims (256-aligned on v6e/v7x, 128 on v5e)
    # with a VMEM accumulator and single-buffered (pl.Buffered(1)) weights.
    return pl.pallas_call(
        functools.partial(_post_attn_kernel, eps=eps),
        out_shape=jax.ShapeDtypeStruct((n, h), ctx2d.dtype),
        grid=(n // tm,),
        in_specs=[
            pl.BlockSpec((tm, h), lambda i: (i, 0)),
            pl.BlockSpec((tm, h), lambda i: (i, 0)),
            pl.BlockSpec((h, h), lambda i: (0, 0)),
            pl.BlockSpec((1, h), lambda i: (0, 0)),
            pl.BlockSpec((h, ffn), lambda i: (0, 0)),
            pl.BlockSpec((h, ffn), lambda i: (0, 0)),
            pl.BlockSpec((ffn, h), lambda i: (0, 0)),
        ],
        out_specs=pl.BlockSpec((tm, h), lambda i: (i, 0)),
        compiler_params=pltpu.CompilerParams(dimension_semantics=("parallel",)),
        cost_estimate=pl.CostEstimate(flops=flops, transcendentals=n + n * ffn,
                                      bytes_accessed=bytes_accessed),
    )(ctx2d, resid2d, wo, ln2_w, w_gate, w_up, w2)


# ------------------------------ JAX glue ------------------------------------

def glm_block_forward(params, hidden_states, attention_mask, rope_cache, cfg,
                      kv_cache=None, use_cache=True):
    # attention_mask=None -> causal mask computed in-kernel (ChatGLM2 default).
    # TODO(synk): padding masks via scalar-prefetched per-row lengths.
    if attention_mask is not None:
        raise NotImplementedError("only causal (attention_mask=None) supported")

    s, b, h = hidden_states.shape
    nh, g, hd = cfg["num_heads"], cfg["groups"], cfg["head_dim"]
    gd = g * hd
    eps = cfg["eps"]
    cdt = COMPUTE_DTYPE

    # single layout change at the block boundary: [s,b,h] -> [b,s,h]
    x_bsh = jnp.transpose(hidden_states, (1, 0, 2)).astype(cdt)

    # split the combined qkv weight once (q | k | v columns), cast to bf16
    wqkv, bqkv = params["wqkv"], params["bqkv"]
    wq = wqkv[:, :h].astype(cdt)
    wk = wqkv[:, h:h + gd].astype(cdt)
    wv = wqkv[:, h + gd:].astype(cdt)
    bq = bqkv[:h].reshape(1, h).astype(jnp.float32)
    bk = bqkv[h:h + gd].reshape(1, gd).astype(jnp.float32)
    bv = bqkv[h + gd:].reshape(1, gd).astype(jnp.float32)

    rope_q = _rope_tables(rope_cache, hd, nh)                 # (3, s, h)
    rope_k = _rope_tables(rope_cache, hd, g)                  # (3, s, g*hd)

    # fused input-RMSNorm + QKV (+bias) + RoPE, written attention-ready
    q, k_new, v_new = fused_norm_qkv_rope(
        x_bsh, params["ln1_w"].reshape(1, h).astype(jnp.float32),
        wq, bq, wk, bk, wv, bv, rope_q, rope_k, eps)

    if kv_cache is not None:
        # TODO(synk): preallocate the cache and write the new slice in-kernel
        # via input_output_aliases + pl.ds instead of a per-step concat.
        k_all = jnp.concatenate([kv_cache[0], k_new], axis=1)
        v_all = jnp.concatenate([kv_cache[1], v_new], axis=1)
    else:
        k_all, v_all = k_new, v_new
    new_kv_cache = (k_all, v_all) if use_cache else None

    # effective softmax scale is 1/sqrt(head_dim) (layer-number scaling cancels)
    ctx = attention(q, k_all, v_all, nh, g, hd, 1.0 / math.sqrt(hd))  # (b,s,h)

    # fused out-proj + residual + post-RMSNorm + SwiGLU MLP + residual
    out2d = fused_post_attn(
        ctx.reshape(b * s, h), x_bsh.reshape(b * s, h),
        params["wo"].astype(cdt),
        params["ln2_w"].reshape(1, h).astype(jnp.float32),
        params["w_gate"].astype(cdt), params["w_up"].astype(cdt),
        params["w2"].astype(cdt), eps)

    out = jnp.transpose(out2d.reshape(b, s, h), (1, 0, 2)).astype(hidden_states.dtype)
    return out, new_kv_cache


# --------------------- pure-JAX f32 reference (for checks) ------------------

def _rope_ref(x, rope_cache):
    sq, b_, n, hd = x.shape
    rot = rope_cache.shape[1] * 2
    xr, xp = x[..., :rot], x[..., rot:]
    xr = xr.reshape(sq, b_, n, rot // 2, 2)
    rc = rope_cache.reshape(sq, 1, 1, rot // 2, 2)
    x0, x1 = xr[..., 0], xr[..., 1]
    c, si = rc[..., 0], rc[..., 1]
    out = jnp.stack([x0 * c - x1 * si, x1 * c + x0 * si], axis=-1)
    return jnp.concatenate([out.reshape(sq, b_, n, rot), xp], axis=-1)


def glm_block_reference(params, hidden_states, rope_cache, cfg, kv_cache=None):
    s, b, h = hidden_states.shape
    nh, g, hd = cfg["num_heads"], cfg["groups"], cfg["head_dim"]
    eps = cfg["eps"]
    x = hidden_states.astype(jnp.float32)

    def rms(v, w):
        var = jnp.mean(v * v, axis=-1, keepdims=True)
        return v * jax.lax.rsqrt(var + eps) * w

    xn = rms(x, params["ln1_w"])
    qkv = xn @ params["wqkv"] + params["bqkv"]
    q, k, v = jnp.split(qkv, [h, h + g * hd], axis=-1)
    q = _rope_ref(q.reshape(s, b, nh, hd), rope_cache)
    k = _rope_ref(k.reshape(s, b, g, hd), rope_cache)
    v = v.reshape(s, b, g, hd)
    if kv_cache is not None:
        k = jnp.concatenate([kv_cache[0], k], axis=0)
        v = jnp.concatenate([kv_cache[1], v], axis=0)
    new_cache = (k, v)
    sk = k.shape[0]
    kr = jnp.repeat(k, nh // g, axis=2)
    vr = jnp.repeat(v, nh // g, axis=2)
    scores = jnp.einsum('qbnd,kbnd->bnqk', q, kr) / math.sqrt(hd)
    mask = jnp.arange(sk)[None, :] > jnp.arange(s)[:, None] + (sk - s)
    scores = jnp.where(mask, -1e9, scores)
    p = jax.nn.softmax(scores, axis=-1)
    ctx = jnp.einsum('bnqk,kbnd->qbnd', p, vr).reshape(s, b, h)
    attn_out = ctx @ params["wo"]
    ln_in = x + attn_out
    x2 = rms(ln_in, params["ln2_w"])
    gate = x2 @ params["w_gate"]
    up = x2 @ params["w_up"]
    mlp = (gate * jax.nn.sigmoid(gate) * up) @ params["w2"]
    return ln_in + mlp, new_cache


# ------------------------------- driver ------------------------------------

if __name__ == "__main__":
    S, B, H = 16, 2, 32
    NH, G = 4, 2
    HD = H // NH
    FFN = 64
    EPS = 1e-5
    cfg = dict(num_heads=NH, groups=G, head_dim=HD, ffn=FFN, eps=EPS)

    key = jax.random.PRNGKey(0)
    ks = jax.random.split(key, 8)
    std = 0.02
    qkv_out = H + 2 * G * HD

    params = {
        "ln1_w":  jnp.ones((H,), jnp.float32),
        "ln2_w":  jnp.ones((H,), jnp.float32),
        "wqkv":   std * jax.random.normal(ks[0], (H, qkv_out), jnp.float32),
        "bqkv":   std * jax.random.normal(ks[1], (qkv_out,), jnp.float32),
        "wo":     std * jax.random.normal(ks[2], (H, H), jnp.float32),
        "w_gate": std * jax.random.normal(ks[3], (H, FFN), jnp.float32),
        "w_up":   std * jax.random.normal(ks[4], (H, FFN), jnp.float32),
        "w2":     std * jax.random.normal(ks[5], (FFN, H), jnp.float32),
    }

    hidden_states = jax.random.normal(ks[6], (S, B, H), jnp.float32)
    full_rope = build_rope_cache(S + 1, HD // 2)              # [S+1, HD//4, 2]

    # --- prefill: causal self-attention over the prompt ---
    out, kv_cache = glm_block_forward(params, hidden_states, None,
                                      full_rope[:S], cfg,
                                      kv_cache=None, use_cache=True)
    jax.block_until_ready(out)
    assert out.shape == (S, B, H)
    assert kv_cache[0].shape == (B, S, G * HD)
    assert kv_cache[1].shape == (B, S, G * HD)

    ref_out, ref_cache = glm_block_reference(params, hidden_states,
                                             full_rope[:S], cfg)
    err = float(jnp.max(jnp.abs(out - ref_out)))
    assert err < 5e-2, f"prefill mismatch vs reference: {err}"

    # --- one cached decode step (exercises the sk > sq causal-offset path) ---
    new_tok = jax.random.normal(ks[7], (1, B, H), jnp.float32)
    out2, kv_cache2 = glm_block_forward(params, new_tok, None,
                                        full_rope[S:S + 1], cfg,
                                        kv_cache=kv_cache, use_cache=True)
    jax.block_until_ready(out2)
    assert out2.shape == (1, B, H)
    assert kv_cache2[0].shape == (B, S + 1, G * HD)

    ref_out2, _ = glm_block_reference(params, new_tok, full_rope[S:S + 1], cfg,
                                      kv_cache=ref_cache)
    err2 = float(jnp.max(jnp.abs(out2 - ref_out2)))
    assert err2 < 5e-2, f"decode mismatch vs reference: {err2}"

    print("KERNEL_OK")
</pallas_src>

<mosaic_0001>
module attributes {stable_mosaic.version = 11 : i64} {
  func.func @_norm_qkv_rope_kernel(%arg0: i32, %arg1: memref<1x16x32xbf16, #tpu.memory_space<vmem>>, %arg2: memref<1x32xf32, #tpu.memory_space<vmem>>, %arg3: memref<32x32xbf16, #tpu.memory_space<vmem>>, %arg4: memref<1x32xf32, #tpu.memory_space<vmem>>, %arg5: memref<32x16xbf16, #tpu.memory_space<vmem>>, %arg6: memref<1x16xf32, #tpu.memory_space<vmem>>, %arg7: memref<32x16xbf16, #tpu.memory_space<vmem>>, %arg8: memref<1x16xf32, #tpu.memory_space<vmem>>, %arg9: memref<3x16x32xf32, #tpu.memory_space<vmem>>, %arg10: memref<3x16x16xf32, #tpu.memory_space<vmem>>, %arg11: memref<1x16x32xbf16, #tpu.memory_space<vmem>>, %arg12: memref<1x16x16xbf16, #tpu.memory_space<vmem>>, %arg13: memref<1x16x16xbf16, #tpu.memory_space<vmem>>) attributes {dimension_semantics = [#tpu.dimension_semantics<parallel>], iteration_bounds = array<i64: 2>, scalar_prefetch = 0 : i64, scratch_operands = 0 : i64, tpu.core_type = #tpu.core_type<tc>, window_params = [{transform_indices = @transform_0, window_bounds = array<i64: 1, 16, 32>}, {pipeline_mode = #tpu.pipeline_mode<synchronous>, transform_indices = @transform_1, window_bounds = array<i64: 1, 32>}, {pipeline_mode = #tpu.pipeline_mode<synchronous>, transform_indices = @transform_2, window_bounds = array<i64: 32, 32>}, {pipeline_mode = #tpu.pipeline_mode<synchronous>, transform_indices = @transform_3, window_bounds = array<i64: 1, 32>}, {pipeline_mode = #tpu.pipeline_mode<synchronous>, transform_indices = @transform_4, window_bounds = array<i64: 32, 16>}, {pipeline_mode = #tpu.pipeline_mode<synchronous>, transform_indices = @transform_5, window_bounds = array<i64: 1, 16>}, {pipeline_mode = #tpu.pipeline_mode<synchronous>, transform_indices = @transform_6, window_bounds = array<i64: 32, 16>}, {pipeline_mode = #tpu.pipeline_mode<synchronous>, transform_indices = @transform_7, window_bounds = array<i64: 1, 16>}, {pipeline_mode = #tpu.pipeline_mode<synchronous>, transform_indices = @transform_8, window_bounds = array<i64: 3, 16, 32>}, {pipeline_mode = #tpu.pipeline_mode<synchronous>, transform_indices = @transform_9, window_bounds = array<i64: 3, 16, 16>}, {transform_indices = @transform_10, window_bounds = array<i64: 1, 16, 32>}, {transform_indices = @transform_11, window_bounds = array<i64: 1, 16, 16>}, {transform_indices = @transform_12, window_bounds = array<i64: 1, 16, 16>}]} {
    %c0 = arith.constant 0 : index
    %c0_0 = arith.constant 0 : index
    %c0_1 = arith.constant 0 : index
    %0 = vector.load %arg1[%c0, %c0_0, %c0_1] : memref<1x16x32xbf16, #tpu.memory_space<vmem>>, vector<1x16x32xbf16>
    %1 = vector.shape_cast %0 : vector<1x16x32xbf16> to vector<16x32xbf16>
    %2 = arith.extf %1 : vector<16x32xbf16> to vector<16x32xf32>
    %3 = arith.mulf %2, %2 : vector<16x32xf32>
    %cst = arith.constant dense<0.000000e+00> : vector<16xf32>
    %4 = vector.multi_reduction <add>, %3, %cst [1] : vector<16x32xf32> to vector<16xf32>
    %5 = vector.shape_cast %4 : vector<16xf32> to vector<16x1xf32>
    %cst_2 = arith.constant 3.200000e+01 : f32
    %6 = vector.broadcast %cst_2 : f32 to vector<16x1xf32>
    %7 = arith.divf %5, %6 : vector<16x1xf32>
    %cst_3 = arith.constant 9.99999974E-6 : f32
    %8 = vector.broadcast %cst_3 : f32 to vector<16x1xf32>
    %9 = arith.addf %7, %8 : vector<16x1xf32>
    %10 = math.rsqrt %9 : vector<16x1xf32>
    %11 = vector.broadcast %10 : vector<16x1xf32> to vector<16x32xf32>
    %12 = arith.mulf %2, %11 : vector<16x32xf32>
    %c0_4 = arith.constant 0 : index
    %c0_5 = arith.constant 0 : index
    %13 = vector.load %arg2[%c0_4, %c0_5] : memref<1x32xf32, #tpu.memory_space<vmem>>, vector<1x32xf32>
    %14 = vector.broadcast %13 : vector<1x32xf32> to vector<16x32xf32>
    %15 = arith.mulf %12, %14 : vector<16x32xf32>
    %16 = arith.truncf %15 : vector<16x32xf32> to vector<16x32xbf16>
    %c0_6 = arith.constant 0 : index
    %c0_7 = arith.constant 0 : index
    %17 = vector.load %arg3[%c0_6, %c0_7] : memref<32x32xbf16, #tpu.memory_space<vmem>>, vector<32x32xbf16>
    %cst_8 = arith.constant dense<0.000000e+00> : vector<16x32xf32>
    %18 = tpu.matmul %16, %17, %cst_8 {dimension_numbers = #tpu.dot_dimension_numbers<[1], [0], [0], [1], [0, 0, 1, 1], [], []>} : vector<16x32xbf16>, vector<32x32xbf16>, vector<16x32xf32> -> vector<16x32xf32>
    %c0_9 = arith.constant 0 : index
    %c0_10 = arith.constant 0 : index
    %19 = vector.load %arg4[%c0_9, %c0_10] : memref<1x32xf32, #tpu.memory_space<vmem>>, vector<1x32xf32>
    %20 = vector.broadcast %19 : vector<1x32xf32> to vector<16x32xf32>
    %21 = arith.addf %18, %20 : vector<16x32xf32>
    %c0_11 = arith.constant 0 : index
    %c0_12 = arith.constant 0 : index
    %c0_13 = arith.constant 0 : index
    %22 = vector.load %arg9[%c0_11, %c0_12, %c0_13] : memref<3x16x32xf32, #tpu.memory_space<vmem>>, vector<1x16x32xf32>
    %23 = vector.shape_cast %22 : vector<1x16x32xf32> to vector<16x32xf32>
    %c1 = arith.constant 1 : index
    %c0_14 = arith.constant 0 : index
    %c0_15 = arith.constant 0 : index
    %24 = vector.load %arg9[%c1, %c0_14, %c0_15] : memref<3x16x32xf32, #tpu.memory_space<vmem>>, vector<1x16x32xf32>
    %25 = vector.shape_cast %24 : vector<1x16x32xf32> to vector<16x32xf32>
    %c2 = arith.constant 2 : index
    %c0_16 = arith.constant 0 : index
    %c0_17 = arith.constant 0 : index
    %26 = vector.load %arg9[%c2, %c0_16, %c0_17] : memref<3x16x32xf32, #tpu.memory_space<vmem>>, vector<1x16x32xf32>
    %27 = vector.shape_cast %26 : vector<1x16x32xf32> to vector<16x32xf32>
    %28 = vector.extract_strided_slice %21 {offsets = [0, 1], sizes = [16, 31], strides = [1, 1]} : vector<16x32xf32> to vector<16x31xf32>
    %29 = vector.extract_strided_slice %21 {offsets = [0, 0], sizes = [16, 1], strides = [1, 1]} : vector<16x32xf32> to vector<16x1xf32>
    %30 = tpu.concatenate %28, %29 in 1 : vector<16x31xf32>, vector<16x1xf32> -> vector<16x32xf32>
    %31 = vector.extract_strided_slice %21 {offsets = [0, 31], sizes = [16, 1], strides = [1, 1]} : vector<16x32xf32> to vector<16x1xf32>
    %32 = vector.extract_strided_slice %21 {offsets = [0, 0], sizes = [16, 31], strides = [1, 1]} : vector<16x32xf32> to vector<16x31xf32>
    %33 = tpu.concatenate %31, %32 in 1 : vector<16x1xf32>, vector<16x31xf32> -> vector<16x32xf32>
    %34 = arith.mulf %21, %23 : vector<16x32xf32>
    %35 = arith.mulf %30, %25 : vector<16x32xf32>
    %36 = arith.addf %34, %35 : vector<16x32xf32>
    %37 = arith.mulf %33, %27 : vector<16x32xf32>
    %38 = arith.addf %36, %37 : vector<16x32xf32>
    %c0_18 = arith.constant 0 : index
    %c0_19 = arith.constant 0 : index
    %39 = vector.load %arg5[%c0_18, %c0_19] : memref<32x16xbf16, #tpu.memory_space<vmem>>, vector<32x16xbf16>
    %cst_20 = arith.constant dense<0.000000e+00> : vector<16x16xf32>
    %40 = tpu.matmul %16, %39, %cst_20 {dimension_numbers = #tpu.dot_dimension_numbers<[1], [0], [0], [1], [0, 0, 1, 1], [], []>} : vector<16x32xbf16>, vector<32x16xbf16>, vector<16x16xf32> -> vector<16x16xf32>
    %c0_21 = arith.constant 0 : index
    %c0_22 = arith.constant 0 : index
    %41 = vector.load %arg6[%c0_21, %c0_22] : memref<1x16xf32, #tpu.memory_space<vmem>>, vector<1x16xf32>
    %42 = vector.broadcast %41 : vector<1x16xf32> to vector<16x16xf32>
    %43 = arith.addf %40, %42 : vector<16x16xf32>
    %c0_23 = arith.constant 0 : index
    %c0_24 = arith.constant 0 : index
    %c0_25 = arith.constant 0 : index
    %44 = vector.load %arg10[%c0_23, %c0_24, %c0_25] : memref<3x16x16xf32, #tpu.memory_space<vmem>>, vector<1x16x16xf32>
    %45 = vector.shape_cast %44 : vector<1x16x16xf32> to vector<16x16xf32>
    %c1_26 = arith.constant 1 : index
    %c0_27 = arith.constant 0 : index
    %c0_28 = arith.constant 0 : index
    %46 = vector.load %arg10[%c1_26, %c0_27, %c0_28] : memref<3x16x16xf32, #tpu.memory_space<vmem>>, vector<1x16x16xf32>
    %47 = vector.shape_cast %46 : vector<1x16x16xf32> to vector<16x16xf32>
    %c2_29 = arith.constant 2 : index
    %c0_30 = arith.constant 0 : index
    %c0_31 = arith.constant 0 : index
    %48 = vector.load %arg10[%c2_29, %c0_30, %c0_31] : memref<3x16x16xf32, #tpu.memory_space<vmem>>, vector<1x16x16xf32>
    %49 = vector.shape_cast %48 : vector<1x16x16xf32> to vector<16x16xf32>
    %50 = vector.extract_strided_slice %43 {offsets = [0, 1], sizes = [16, 15], strides = [1, 1]} : vector<16x16xf32> to vector<16x15xf32>
    %51 = vector.extract_strided_slice %43 {offsets = [0, 0], sizes = [16, 1], strides = [1, 1]} : vector<16x16xf32> to vector<16x1xf32>
    %52 = tpu.concatenate %50, %51 in 1 : vector<16x15xf32>, vector<16x1xf32> -> vector<16x16xf32>
    %53 = vector.extract_strided_slice %43 {offsets = [0, 15], sizes = [16, 1], strides = [1, 1]} : vector<16x16xf32> to vector<16x1xf32>
    %54 = vector.extract_strided_slice %43 {offsets = [0, 0], sizes = [16, 15], strides = [1, 1]} : vector<16x16xf32> to vector<16x15xf32>
    %55 = tpu.concatenate %53, %54 in 1 : vector<16x1xf32>, vector<16x15xf32> -> vector<16x16xf32>
    %56 = arith.mulf %43, %45 : vector<16x16xf32>
    %57 = arith.mulf %52, %47 : vector<16x16xf32>
    %58 = arith.addf %56, %57 : vector<16x16xf32>
    %59 = arith.mulf %55, %49 : vector<16x16xf32>
    %60 = arith.addf %58, %59 : vector<16x16xf32>
    %c0_32 = arith.constant 0 : index
    %c0_33 = arith.constant 0 : index
    %61 = vector.load %arg7[%c0_32, %c0_33] : memref<32x16xbf16, #tpu.memory_space<vmem>>, vector<32x16xbf16>
    %cst_34 = arith.constant dense<0.000000e+00> : vector<16x16xf32>
    %62 = tpu.matmul %16, %61, %cst_34 {dimension_numbers = #tpu.dot_dimension_numbers<[1], [0], [0], [1], [0, 0, 1, 1], [], []>} : vector<16x32xbf16>, vector<32x16xbf16>, vector<16x16xf32> -> vector<16x16xf32>
    %c0_35 = arith.constant 0 : index
    %c0_36 = arith.constant 0 : index
    %63 = vector.load %arg8[%c0_35, %c0_36] : memref<1x16xf32, #tpu.memory_space<vmem>>, vector<1x16xf32>
    %64 = vector.broadcast %63 : vector<1x16xf32> to vector<16x16xf32>
    %65 = arith.addf %62, %64 : vector<16x16xf32>
    %66 = arith.truncf %38 : vector<16x32xf32> to vector<16x32xbf16>
    %c0_37 = arith.constant 0 : index
    %c0_38 = arith.constant 0 : index
    %c0_39 = arith.constant 0 : index
    %67 = vector.load %arg11[%c0_37, %c0_38, %c0_39] : memref<1x16x32xbf16, #tpu.memory_space<vmem>>, vector<1x16x32xbf16>
    %68 = vector.shape_cast %67 : vector<1x16x32xbf16> to vector<16x32xbf16>
    %69 = vector.shape_cast %66 : vector<16x32xbf16> to vector<1x16x32xbf16>
    tpu.vector_store %arg11[%c0_37, %c0_38, %c0_39], %69 {strides = array<i32>} : memref<1x16x32xbf16, #tpu.memory_space<vmem>>, vector<1x16x32xbf16>,
    %70 = arith.truncf %60 : vector<16x16xf32> to vector<16x16xbf16>
    %c0_40 = arith.constant 0 : index
    %c0_41 = arith.constant 0 : index
    %c0_42 = arith.constant 0 : index
    %71 = vector.load %arg12[%c0_40, %c0_41, %c0_42] : memref<1x16x16xbf16, #tpu.memory_space<vmem>>, vector<1x16x16xbf16>
    %72 = vector.shape_cast %71 : vector<1x16x16xbf16> to vector<16x16xbf16>
    %73 = vector.shape_cast %70 : vector<16x16xbf16> to vector<1x16x16xbf16>
    tpu.vector_store %arg12[%c0_40, %c0_41, %c0_42], %73 {strides = array<i32>} : memref<1x16x16xbf16, #tpu.memory_space<vmem>>, vector<1x16x16xbf16>,
    %74 = arith.truncf %65 : vector<16x16xf32> to vector<16x16xbf16>
    %c0_43 = arith.constant 0 : index
    %c0_44 = arith.constant 0 : index
    %c0_45 = arith.constant 0 : index
    %75 = vector.load %arg13[%c0_43, %c0_44, %c0_45] : memref<1x16x16xbf16, #tpu.memory_space<vmem>>, vector<1x16x16xbf16>
    %76 = vector.shape_cast %75 : vector<1x16x16xbf16> to vector<16x16xbf16>
    %77 = vector.shape_cast %74 : vector<16x16xbf16> to vector<1x16x16xbf16>
    tpu.vector_store %arg13[%c0_43, %c0_44, %c0_45], %77 {strides = array<i32>} : memref<1x16x16xbf16, #tpu.memory_space<vmem>>, vector<1x16x16xbf16>,
    return
  }
  func.func @transform_0(%arg0: i32) -> (i32, i32, i32) {
    %c0_i32 = arith.constant 0 : i32
    %c0_i32_0 = arith.constant 0 : i32
    %c0_i32_1 = arith.constant 0 : i32
    return %arg0, %c0_i32, %c0_i32_0 : i32, i32, i32
  }
  func.func @transform_1(%arg0: i32) -> (i32, i32) {
    %c0_i32 = arith.constant 0 : i32
    %c0_i32_0 = arith.constant 0 : i32
    %c0_i32_1 = arith.constant 0 : i32
    return %c0_i32, %c0_i32_0 : i32, i32
  }
  func.func @transform_2(%arg0: i32) -> (i32, i32) {
    %c0_i32 = arith.constant 0 : i32
    %c0_i32_0 = arith.constant 0 : i32
    %c0_i32_1 = arith.constant 0 : i32
    return %c0_i32, %c0_i32_0 : i32, i32
  }
  func.func @transform_3(%arg0: i32) -> (i32, i32) {
    %c0_i32 = arith.constant 0 : i32
    %c0_i32_0 = arith.constant 0 : i32
    %c0_i32_1 = arith.constant 0 : i32
    return %c0_i32, %c0_i32_0 : i32, i32
  }
  func.func @transform_4(%arg0: i32) -> (i32, i32) {
    %c0_i32 = arith.constant 0 : i32
    %c0_i32_0 = arith.constant 0 : i32
    %c0_i32_1 = arith.constant 0 : i32
    return %c0_i32, %c0_i32_0 : i32, i32
  }
  func.func @transform_5(%arg0: i32) -> (i32, i32) {
    %c0_i32 = arith.constant 0 : i32
    %c0_i32_0 = arith.constant 0 : i32
    %c0_i32_1 = arith.constant 0 : i32
    return %c0_i32, %c0_i32_0 : i32, i32
  }
  func.func @transform_6(%arg0: i32) -> (i32, i32) {
    %c0_i32 = arith.constant 0 : i32
    %c0_i32_0 = arith.constant 0 : i32
    %c0_i32_1 = arith.constant 0 : i32
    return %c0_i32, %c0_i32_0 : i32, i32
  }
  func.func @transform_7(%arg0: i32) -> (i32, i32) {
    %c0_i32 = arith.constant 0 : i32
    %c0_i32_0 = arith.constant 0 : i32
    %c0_i32_1 = arith.constant 0 : i32
    return %c0_i32, %c0_i32_0 : i32, i32
  }
  func.func @transform_8(%arg0: i32) -> (i32, i32, i32) {
    %c0_i32 = arith.constant 0 : i32
    %c0_i32_0 = arith.constant 0 : i32
    %c0_i32_1 = arith.constant 0 : i32
    %c0_i32_2 = arith.constant 0 : i32
    return %c0_i32, %c0_i32_0, %c0_i32_1 : i32, i32, i32
  }
  func.func @transform_9(%arg0: i32) -> (i32, i32, i32) {
    %c0_i32 = arith.constant 0 : i32
    %c0_i32_0 = arith.constant 0 : i32
    %c0_i32_1 = arith.constant 0 : i32
    %c0_i32_2 = arith.constant 0 : i32
    return %c0_i32, %c0_i32_0, %c0_i32_1 : i32, i32, i32
  }
  func.func @transform_10(%arg0: i32) -> (i32, i32, i32) {
    %c0_i32 = arith.constant 0 : i32
    %c0_i32_0 = arith.constant 0 : i32
    %c0_i32_1 = arith.constant 0 : i32
    return %arg0, %c0_i32, %c0_i32_0 : i32, i32, i32
  }
  func.func @transform_11(%arg0: i32) -> (i32, i32, i32) {
    %c0_i32 = arith.constant 0 : i32
    %c0_i32_0 = arith.constant 0 : i32
    %c0_i32_1 = arith.constant 0 : i32
    return %arg0, %c0_i32, %c0_i32_0 : i32, i32, i32
  }
  func.func @transform_12(%arg0: i32) -> (i32, i32, i32) {
    %c0_i32 = arith.constant 0 : i32
    %c0_i32_0 = arith.constant 0 : i32
    %c0_i32_1 = arith.constant 0 : i32
    return %arg0, %c0_i32, %c0_i32_0 : i32, i32, i32
  }
}

</mosaic_0001>

<llo_original>
// kernel: tpu_custom_call.1
$region0: #{tpu_custom_call.1}
  #allocation0 [shape = 'u32[]', space=smem, size = 0x4, offset = 0x4, fixed_abs, tag = 'smem constant byte address 0x4 - core index']
  #allocation1 [shape = 'u32[144,128]{1,0:T(1,128)}', space=vmem, size = 0x12000, scoped, tag = 'internal scratch']
  %s0 = inlined_call_operand.hbm [shape: bf16[2,16,32], index: 0, kind: input, shape index: {}]
  %s1 = inlined_call_operand.vmem [shape: f32[1,32], index: 1, kind: input, shape index: {}]
  %s2 = inlined_call_operand.hbm [shape: bf16[32,32], index: 2, kind: input, shape index: {}]
  %s3 = inlined_call_operand.vmem [shape: f32[1,32], index: 3, kind: input, shape index: {}]
  %s4 = inlined_call_operand.vmem [shape: bf16[32,16], index: 4, kind: input, shape index: {}]
  %s5 = inlined_call_operand.vmem [shape: f32[1,16], index: 5, kind: input, shape index: {}]
  %s6 = inlined_call_operand.vmem [shape: bf16[32,16], index: 6, kind: input, shape index: {}]
  %s7 = inlined_call_operand.vmem [shape: f32[1,16], index: 7, kind: input, shape index: {}]
  %s8 = inlined_call_operand.vmem [shape: f32[3,16,32], index: 8, kind: input, shape index: {}]
  %s9 = inlined_call_operand.hbm [shape: f32[3,16,16], index: 9, kind: input, shape index: {}]
  %s10 = inlined_call_operand.hbm [shape: bf16[2,16,32], index: 10, kind: output, shape index: {0}]
  %s11 = inlined_call_operand.hbm [shape: bf16[2,16,16], index: 11, kind: output, shape index: {1}]
  %s12 = inlined_call_operand.hbm [shape: bf16[2,16,16], index: 12, kind: output, shape index: {2}]
  %13 = xla_tuple %s10, %s11, %s12
  %s14 = sld [smem:[#allocation0]]
  $region101: #{tpu_custom_call.1} parent=0
    _
  %s16 = ssub.s32 1, %s14
  %s17 = scalar_select 0, %s16, %s14
  $region1: #{tpu_custom_call.1} parent=0
    #allocation2 [shape = 'u8[8192]{0}', space=vmem, size = 0x2000, scoped, tag = 'input window, operand 0']
    #allocation3 [shape = 's32[2]{0}', space=sflag, size = 0x8, scoped, tag = 'scoped memory for tpu_custom_call.1']
    #allocation4 [shape = 's32[2]{0}', space=sflag, size = 0x8, scoped, tag = 'scoped memory for tpu_custom_call.1']
    #allocation5 [shape = 'u8[8192]{0}', space=vmem, size = 0x2000, scoped, tag = 'input window, operand 2, single buffered']
    #allocation6 [shape = 's32[1]{0}', space=sflag, size = 0x4, scoped, tag = 'scoped memory for tpu_custom_call.1']
    #allocation7 [shape = 'u8[24576]{0}', space=vmem, size = 0x6000, scoped, tag = 'input window, operand 9, single buffered']
    #allocation8 [shape = 'u8[8192]{0}', space=vmem, size = 0x2000, scoped, tag = 'output window, operand 0']
    #allocation9 [shape = 'u8[8192]{0}', space=vmem, size = 0x2000, scoped, tag = 'output window, operand 1']
    #allocation10 [shape = 's32[2]{0}', space=sflag, size = 0x8, scoped, tag = 'scoped memory for tpu_custom_call.1']
    #allocation11 [shape = 'u8[8192]{0}', space=vmem, size = 0x2000, scoped, tag = 'output window, operand 2']
    %18 = vsyncpa [#allocation3], 0
    %s19 = scalar_lea.sflag [#allocation3], 1
    %20 = vsyncpa %s19, 0
    %21 = vsyncpa [#allocation6], 0
    %22 = vsyncpa [#allocation4], 0
    %s23 = scalar_lea.sflag [#allocation4], 1
    %24 = vsyncpa %s23, 0
    %25 = vsyncpa [#allocation10], 0
    %s26 = scalar_lea.sflag [#allocation10], 1
    %27 = vsyncpa %s26, 0
    loop: start=0, step=1, limit=4
    $region2: #{tpu_custom_call.1} parent=1 // loop_pre_header
      _
    $region3: #{tpu_custom_call.1} parent=1 // loop_header
      %s29 = sphi 0, %s33
      %p30 = scmp.ge.s32.totalorder %s29, 4
      %s39 = sphi 0, %s41
      %s42 = sphi 0, %s39
      %s43 = sphi 0, %s42
      %s59 = sphi 0, %s43
      %s63 = sphi 0, %s63
      %s65 = sphi 0, %s63
      %s66 = sphi 0, %s65
      %s80 = sphi 0, %s66
      %s84 = sphi 0, %s84
      %s86 = sphi 0, %s84
      %s87 = sphi 0, %s86
      %s101 = sphi 0, %s87
      %s105 = sphi 0, %s105
      %s107 = sphi 0, %s105
      %s108 = sphi 0, %s107
      %s122 = sphi 0, %s108
      %s126 = sphi 0, %s126
      %s128 = sphi 0, %s126
      %s129 = sphi 0, %s128
      %s143 = sphi 0, %s129
      %s147 = sphi 0, %s147
      %s149 = sphi 0, %s147
      %s150 = sphi 0, %s149
      %s164 = sphi 0, %s150
      %s168 = sphi 0, %s168
      %s170 = sphi 0, %s168
      %s171 = sphi 0, %s170
      %s185 = sphi 0, %s171
      %s189 = sphi 0, %s189
      %s191 = sphi 0, %s189
      %s192 = sphi 0, %s191
      %s206 = sphi 0, %s192
      %s210 = sphi 0, %s210
      %s212 = sphi 0, %s210
      %s213 = sphi 0, %s212
      %s227 = sphi 0, %s213
      %s231 = sphi 0, %s231
      %s233 = sphi 0, %s231
      %s234 = sphi 0, %s233
      %s248 = sphi 0, %s234
      %s254 = sphi 0, %s256
      %s257 = sphi 0, %s254
      %s258 = sphi 0, %s257
      %s274 = sphi 0, %s258
      %s280 = sphi 0, %s282
      %s283 = sphi 0, %s280
      %s284 = sphi 0, %s283
      %s300 = sphi 0, %s284
      %s306 = sphi 0, %s308
      %s309 = sphi 0, %s306
      %s310 = sphi 0, %s309
      %s326 = sphi 0, %s310
    $region4: #{tpu_custom_call.1} parent=1 // loop_header_branch
      %32 = sbr.rel (%p30) target = $region8
    $region5: #{tpu_custom_call.1} parent=1 // loop_body
      %s34 = ssub.s32 %s29, 1
      %s35 = ssub.s32 %s29, 2
      %s36 = sadd.s32 %s29, 1
      %s37 = ssub.s32 %s29, %s36
      %p38 = scmp.eq.s32.totalorder %s37, 0
      %s40 = sadd.s32 %s39, 1
      %s41 = scalar_select %p38, %s39, %s40
      %p44 = pneg %p38
      %p45 = scmp.eq.s32.totalorder %s29, 1
      %p46 = por %p44, %p45
      %p47 = scmp.ne.s32.totalorder %s39, %s42
      %p48 = scmp.eq.s32.totalorder %s29, 0
      %p49 = por %p47, %p48
      %p50 = scmp.ne.s32.totalorder %s39, %s42
      %p51 = scmp.eq.s32.totalorder %s34, 1
      %p52 = por %p50, %p51
      %p53 = scmp.ne.s32.totalorder %s42, %s43
      %p54 = scmp.eq.s32.totalorder %s34, 0
      %p55 = por %p53, %p54
      %p56 = scmp.ne.s32.totalorder %s42, %s43
      %p57 = scmp.eq.s32.totalorder %s35, 1
      %p58 = por %p56, %p57
      %p60 = scmp.ne.s32.totalorder %s43, %s59
      %p61 = scmp.eq.s32.totalorder %s35, 0
      %p62 = por %p60, %p61
      %s64 = sadd.s32 %s63, 1
      %p67 = scmp.eq.s32.totalorder %s29, 1
      %p68 = scmp.ne.s32.totalorder %s63, %s65
      %p69 = scmp.eq.s32.totalorder %s29, 0
      %p70 = por %p68, %p69
      %p71 = scmp.ne.s32.totalorder %s63, %s65
      %p72 = scmp.eq.s32.totalorder %s34, 1
      %p73 = por %p71, %p72
      %p74 = scmp.ne.s32.totalorder %s65, %s66
      %p75 = scmp.eq.s32.totalorder %s34, 0
      %p76 = por %p74, %p75
      %p77 = scmp.ne.s32.totalorder %s65, %s66
      %p78 = scmp.eq.s32.totalorder %s35, 1
      %p79 = por %p77, %p78
      %p81 = scmp.ne.s32.totalorder %s66, %s80
      %p82 = scmp.eq.s32.totalorder %s35, 0
      %p83 = por %p81, %p82
      %s85 = sadd.s32 %s84, 1
      %p88 = scmp.eq.s32.totalorder %s29, 1
      %p89 = scmp.ne.s32.totalorder %s84, %s86
      %p90 = scmp.eq.s32.totalorder %s29, 0
      %p91 = por %p89, %p90
      %p92 = scmp.ne.s32.totalorder %s84, %s86
      %p93 = scmp.eq.s32.totalorder %s34, 1
      %p94 = por %p92, %p93
      %p95 = scmp.ne.s32.totalorder %s86, %s87
      %p96 = scmp.eq.s32.totalorder %s34, 0
      %p97 = por %p95, %p96
      %p98 = scmp.ne.s32.totalorder %s86, %s87
      %p99 = scmp.eq.s32.totalorder %s35, 1
      %p100 = por %p98, %p99
      %p102 = scmp.ne.s32.totalorder %s87, %s101
      %p103 = scmp.eq.s32.totalorder %s35, 0
      %p104 = por %p102, %p103
      %s106 = sadd.s32 %s105, 1
      %p109 = scmp.eq.s32.totalorder %s29, 1
      %p110 = scmp.ne.s32.totalorder %s105, %s107
      %p111 = scmp.eq.s32.totalorder %s29, 0
      %p112 = por %p110, %p111
      %p113 = scmp.ne.s32.totalorder %s105, %s107
      %p114 = scmp.eq.s32.totalorder %s34, 1
      %p115 = por %p113, %p114
      %p116 = scmp.ne.s32.totalorder %s107, %s108
      %p117 = scmp.eq.s32.totalorder %s34, 0
      %p118 = por %p116, %p117
      %p119 = scmp.ne.s32.totalorder %s107, %s108
      %p120 = scmp.eq.s32.totalorder %s35, 1
      %p121 = por %p119, %p120
      %p123 = scmp.ne.s32.totalorder %s108, %s122
      %p124 = scmp.eq.s32.totalorder %s35, 0
      %p125 = por %p123, %p124
      %s127 = sadd.s32 %s126, 1
      %p130 = scmp.eq.s32.totalorder %s29, 1
      %p131 = scmp.ne.s32.totalorder %s126, %s128
      %p132 = scmp.eq.s32.totalorder %s29, 0
      %p133 = por %p131, %p132
      %p134 = scmp.ne.s32.totalorder %s126, %s128
      %p135 = scmp.eq.s32.totalorder %s34, 1
      %p136 = por %p134, %p135
      %p137 = scmp.ne.s32.totalorder %s128, %s129
      %p138 = scmp.eq.s32.totalorder %s34, 0
      %p139 = por %p137, %p138
      %p140 = scmp.ne.s32.totalorder %s128, %s129
      %p141 = scmp.eq.s32.totalorder %s35, 1
      %p142 = por %p140, %p141
      %p144 = scmp.ne.s32.totalorder %s129, %s143
      %p145 = scmp.eq.s32.totalorder %s35, 0
      %p146 = por %p144, %p145
      %s148 = sadd.s32 %s147, 1
      %p151 = scmp.eq.s32.totalorder %s29, 1
      %p152 = scmp.ne.s32.totalorder %s147, %s149
      %p153 = scmp.eq.s32.totalorder %s29, 0
      %p154 = por %p152, %p153
      %p155 = scmp.ne.s32.totalorder %s147, %s149
      %p156 = scmp.eq.s32.totalorder %s34, 1
      %p157 = por %p155, %p156
      %p158 = scmp.ne.s32.totalorder %s149, %s150
      %p159 = scmp.eq.s32.totalorder %s34, 0
      %p160 = por %p158, %p159
      %p161 = scmp.ne.s32.totalorder %s149, %s150
      %p162 = scmp.eq.s32.totalorder %s35, 1
      %p163 = por %p161, %p162
      %p165 = scmp.ne.s32.totalorder %s150, %s164
      %p166 = scmp.eq.s32.totalorder %s35, 0
      %p167 = por %p165, %p166
      %s169 = sadd.s32 %s168, 1
      %p172 = scmp.eq.s32.totalorder %s29, 1
      %p173 = scmp.ne.s32.totalorder %s168, %s170
      %p174 = scmp.eq.s32.totalorder %s29, 0
      %p175 = por %p173, %p174
      %p176 = scmp.ne.s32.totalorder %s168, %s170
      %p177 = scmp.eq.s32.totalorder %s34, 1
      %p178 = por %p176, %p177
      %p179 = scmp.ne.s32.totalorder %s170, %s171
      %p180 = scmp.eq.s32.totalorder %s34, 0
      %p181 = por %p179, %p180
      %p182 = scmp.ne.s32.totalorder %s170, %s171
      %p183 = scmp.eq.s32.totalorder %s35, 1
      %p184 = por %p182, %p183
      %p186 = scmp.ne.s32.totalorder %s171, %s185
      %p187 = scmp.eq.s32.totalorder %s35, 0
      %p188 = por %p186, %p187
      %s190 = sadd.s32 %s189, 1
      %p193 = scmp.eq.s32.totalorder %s29, 1
      %p194 = scmp.ne.s32.totalorder %s189, %s191
      %p195 = scmp.eq.s32.totalorder %s29, 0
      %p196 = por %p194, %p195
      %p197 = scmp.ne.s32.totalorder %s189, %s191
      %p198 = scmp.eq.s32.totalorder %s34, 1
      %p199 = por %p197, %p198
      %p200 = scmp.ne.s32.totalorder %s191, %s192
      %p201 = scmp.eq.s32.totalorder %s34, 0
      %p202 = por %p200, %p201
      %p203 = scmp.ne.s32.totalorder %s191, %s192
      %p204 = scmp.eq.s32.totalorder %s35, 1
      %p205 = por %p203, %p204
      %p207 = scmp.ne.s32.totalorder %s192, %s206
      %p208 = scmp.eq.s32.totalorder %s35, 0
      %p209 = por %p207, %p208
      %s211 = sadd.s32 %s210, 1
      %p214 = scmp.eq.s32.totalorder %s29, 1
      %p215 = scmp.ne.s32.totalorder %s210, %s212
      %p216 = scmp.eq.s32.totalorder %s29, 0
      %p217 = por %p215, %p216
      %p218 = scmp.ne.s32.totalorder %s210, %s212
      %p219 = scmp.eq.s32.totalorder %s34, 1
      %p220 = por %p218, %p219
      %p221 = scmp.ne.s32.totalorder %s212, %s213
      %p222 = scmp.eq.s32.totalorder %s34, 0
      %p223 = por %p221, %p222
      %p224 = scmp.ne.s32.totalorder %s212, %s213
      %p225 = scmp.eq.s32.totalorder %s35, 1
      %p226 = por %p224, %p225
      %p228 = scmp.ne.s32.totalorder %s213, %s227
      %p229 = scmp.eq.s32.totalorder %s35, 0
      %p230 = por %p228, %p229
      %s232 = sadd.s32 %s231, 1
      %p235 = scmp.eq.s32.totalorder %s29, 1
      %p236 = scmp.ne.s32.totalorder %s231, %s233
      %p237 = scmp.eq.s32.totalorder %s29, 0
      %p238 = por %p236, %p237
      %p239 = scmp.ne.s32.totalorder %s231, %s233
      %p240 = scmp.eq.s32.totalorder %s34, 1
      %p241 = por %p239, %p240
      %p242 = scmp.ne.s32.totalorder %s233, %s234
      %p243 = scmp.eq.s32.totalorder %s34, 0
      %p244 = por %p242, %p243
      %p245 = scmp.ne.s32.totalorder %s233, %s234
      %p246 = scmp.eq.s32.totalorder %s35, 1
      %p247 = por %p245, %p246
      %p249 = scmp.ne.s32.totalorder %s234, %s248
      %p250 = scmp.eq.s32.totalorder %s35, 0
      %p251 = por %p249, %p250
      %s252 = ssub.s32 %s29, %s36
      %p253 = scmp.eq.s32.totalorder %s252, 0
      %s255 = sadd.s32 %s254, 1
      %s256 = scalar_select %p253, %s254, %s255
      %p259 = pneg %p253
      %p260 = scmp.eq.s32.totalorder %s29, 1
      %p261 = por %p259, %p260
      %p262 = scmp.ne.s32.totalorder %s254, %s257
      %p263 = scmp.eq.s32.totalorder %s29, 0
      %p264 = por %p262, %p263
      %p265 = scmp.ne.s32.totalorder %s254, %s257
      %p266 = scmp.eq.s32.totalorder %s34, 1
      %p267 = por %p265, %p266
      %p268 = scmp.ne.s32.totalorder %s257, %s258
      %p269 = scmp.eq.s32.totalorder %s34, 0
      %p270 = por %p268, %p269
      %p271 = scmp.ne.s32.totalorder %s257, %s258
      %p272 = scmp.eq.s32.totalorder %s35, 1
      %p273 = por %p271, %p272
      %p275 = scmp.ne.s32.totalorder %s258, %s274
      %p276 = scmp.eq.s32.totalorder %s35, 0
      %p277 = por %p275, %p276
      %s278 = ssub.s32 %s29, %s36
      %p279 = scmp.eq.s32.totalorder %s278, 0
      %s281 = sadd.s32 %s280, 1
      %s282 = scalar_select %p279, %s280, %s281
      %p285 = pneg %p279
      %p286 = scmp.eq.s32.totalorder %s29, 1
      %p287 = por %p285, %p286
      %p288 = scmp.ne.s32.totalorder %s280, %s283
      %p289 = scmp.eq.s32.totalorder %s29, 0
      %p290 = por %p288, %p289
      %p291 = scmp.ne.s32.totalorder %s280, %s283
      %p292 = scmp.eq.s32.totalorder %s34, 1
      %p293 = por %p291, %p292
      %p294 = scmp.ne.s32.totalorder %s283, %s284
      %p295 = scmp.eq.s32.totalorder %s34, 0
      %p296 = por %p294, %p295
      %p297 = scmp.ne.s32.totalorder %s283, %s284
      %p298 = scmp.eq.s32.totalorder %s35, 1
      %p299 = por %p297, %p298
      %p301 = scmp.ne.s32.totalorder %s284, %s300
      %p302 = scmp.eq.s32.totalorder %s35, 0
      %p303 = por %p301, %p302
      %s304 = ssub.s32 %s29, %s36
      %p305 = scmp.eq.s32.totalorder %s304, 0
      %s307 = sadd.s32 %s306, 1
      %s308 = scalar_select %p305, %s306, %s307
      %p311 = pneg %p305
      %p312 = scmp.eq.s32.totalorder %s29, 1
      %p313 = por %p311, %p312
      %p314 = scmp.ne.s32.totalorder %s306, %s309
      %p315 = scmp.eq.s32.totalorder %s29, 0
      %p316 = por %p314, %p315
      %p317 = scmp.ne.s32.totalorder %s306, %s309
      %p318 = scmp.eq.s32.totalorder %s34, 1
      %p319 = por %p317, %p318
      %p320 = scmp.ne.s32.totalorder %s309, %s310
      %p321 = scmp.eq.s32.totalorder %s34, 0
      %p322 = por %p320, %p321
      %p323 = scmp.ne.s32.totalorder %s309, %s310
      %p324 = scmp.eq.s32.totalorder %s35, 1
      %p325 = por %p323, %p324
      %p327 = scmp.ne.s32.totalorder %s310, %s326
      %p328 = scmp.eq.s32.totalorder %s35, 0
      %p329 = por %p327, %p328
      %p330 = scmp.le.s32.totalorder 1, %s29
      %p331 = scmp.lt.s32.totalorder %s29, 3
      %p332 = pnand %p330, %p331
      %p333 = pneg %p332
      // Predicated region
      $region9: #{tpu_custom_call.1} parent=5 // pred_check
        _
      $region10: #{tpu_custom_call.1} parent=5 // pred_check_branch
        %335 = sbr.rel (%p332) target = $region12
      $region11: #{tpu_custom_call.1} parent=5 // pred_region
        %s336 = ssub.s32 %s29, 1
        // Predicated region
        $region13: #{tpu_custom_call.1} parent=11 // pred_check
          %p337 = pneg %p76
        $region14: #{tpu_custom_call.1} parent=11 // pred_check_branch
          %339 = sbr.rel (%p337) target = $region16
        $region15: #{tpu_custom_call.1} parent=11 // pred_region
          _
        $region16: #{tpu_custom_call.1} parent=11 // pred_fallthru
          _
        // Predicated region
        $region17: #{tpu_custom_call.1} parent=11 // pred_check
          %p340 = pneg %p97
        $region18: #{tpu_custom_call.1} parent=11 // pred_check_branch
          %342 = sbr.rel (%p340) target = $region20
        $region19: #{tpu_custom_call.1} parent=11 // pred_region
          %s344 = ssub.s32 256, 256
          %345 = vsyncadd [#allocation6], %s344
          %s346 = sshll.u32 [#allocation5], 4
          %s347 = int_to_ptr.vmem [resolvable:$true] %s346
          %352 = dma.hbm_to_vmem [thread:$0]  %s2, 256, %s347, [#allocation6], 64, 64, 4
        $region20: #{tpu_custom_call.1} parent=11 // pred_fallthru
          _
        // Predicated region
        $region21: #{tpu_custom_call.1} parent=11 // pred_check
          %p353 = pneg %p118
        $region22: #{tpu_custom_call.1} parent=11 // pred_check_branch
          %355 = sbr.rel (%p353) target = $region24
        $region23: #{tpu_custom_call.1} parent=11 // pred_region
          _
        $region24: #{tpu_custom_call.1} parent=11 // pred_fallthru
          _
        // Predicated region
        $region25: #{tpu_custom_call.1} parent=11 // pred_check
          %p356 = pneg %p139
        $region26: #{tpu_custom_call.1} parent=11 // pred_check_branch
          %358 = sbr.rel (%p356) target = $region28
        $region27: #{tpu_custom_call.1} parent=11 // pred_region
          _
        $region28: #{tpu_custom_call.1} parent=11 // pred_fallthru
          _
        // Predicated region
        $region29: #{tpu_custom_call.1} parent=11 // pred_check
          %p359 = pneg %p160
        $region30: #{tpu_custom_call.1} parent=11 // pred_check_branch
          %361 = sbr.rel (%p359) target = $region32
        $region31: #{tpu_custom_call.1} parent=11 // pred_region
          _
        $region32: #{tpu_custom_call.1} parent=11 // pred_fallthru
          _
        // Predicated region
        $region33: #{tpu_custom_call.1} parent=11 // pred_check
          %p362 = pneg %p181
        $region34: #{tpu_custom_call.1} parent=11 // pred_check_branch
          %364 = sbr.rel (%p362) target = $region36
        $region35: #{tpu_custom_call.1} parent=11 // pred_region
          _
        $region36: #{tpu_custom_call.1} parent=11 // pred_fallthru
          _
        // Predicated region
        $region37: #{tpu_custom_call.1} parent=11 // pred_check
          %p365 = pneg %p202
        $region38: #{tpu_custom_call.1} parent=11 // pred_check_branch
          %367 = sbr.rel (%p365) target = $region40
        $region39: #{tpu_custom_call.1} parent=11 // pred_region
          _
        $region40: #{tpu_custom_call.1} parent=11 // pred_fallthru
          _
        // Predicated region
        $region41: #{tpu_custom_call.1} parent=11 // pred_check
          %p368 = pneg %p223
        $region42: #{tpu_custom_call.1} parent=11 // pred_check_branch
          %370 = sbr.rel (%p368) target = $region44
        $region43: #{tpu_custom_call.1} parent=11 // pred_region
          _
        $region44: #{tpu_custom_call.1} parent=11 // pred_fallthru
          _
        // Predicated region
        $region45: #{tpu_custom_call.1} parent=11 // pred_check
          %p371 = pneg %p244
        $region46: #{tpu_custom_call.1} parent=11 // pred_check_branch
          %373 = sbr.rel (%p371) target = $region48
        $region47: #{tpu_custom_call.1} parent=11 // pred_region
          %s375 = ssub.s32 768, 768
          %376 = vsyncadd [#allocation6], %s375
          %s377 = sshll.u32 [#allocation7], 4
          %s378 = int_to_ptr.vmem [resolvable:$true] %s377
          %383 = dma.hbm_to_vmem [thread:$0]  %s9, 768, %s378, [#allocation6], 128, 128, 8
        $region48: #{tpu_custom_call.1} parent=11 // pred_fallthru
          _
      $region12: #{tpu_custom_call.1} parent=5 // pred_fallthru
        _
      %p384 = scmp.lt.s32.totalorder %s29, 2
      // Predicated region
      $region49: #{tpu_custom_call.1} parent=5 // pred_check
        %p385 = pneg %p384
      $region50: #{tpu_custom_call.1} parent=5 // pred_check_branch
        %387 = sbr.rel (%p385) target = $region52
      $region51: #{tpu_custom_call.1} parent=5 // pred_region
        // Predicated region
        $region53: #{tpu_custom_call.1} parent=51 // pred_check
          %p388 = pneg %p49
        $region54: #{tpu_custom_call.1} parent=51 // pred_check_branch
          %390 = sbr.rel (%p388) target = $region56
        $region55: #{tpu_custom_call.1} parent=51 // pred_region
          %s391 = sand.u32 %s39, 1
          %s392 = scalar_lea.sflag [#allocation3], %s391
          %s393 = sand.u32 %s39, 1
          %s394 = smul.addr %s393, 8
          %s395 = scalar_lea.vmem [#allocation2], %s394
          %s397 = ssub.s32 128, 128
          %398 = vsyncadd %s392, %s397
          %s399 = smul.addr %s29, 2
          %s400 = smul.addr %s399, 64
          %s401 = scalar_lea.hbm %s0, %s400
          %s402 = sshll.u32 %s395, 4
          %s403 = int_to_ptr.vmem [resolvable:$true] %s402
          %408 = dma.hbm_to_vmem [thread:$0]  %s401, 128, %s403, %s392, 64, 64, 4
        $region56: #{tpu_custom_call.1} parent=51 // pred_fallthru
          _
      $region52: #{tpu_custom_call.1} parent=5 // pred_fallthru
        _
      %p409 = scmp.le.s32.totalorder 1, %s29
      %p410 = scmp.lt.s32.totalorder %s29, 3
      %p411 = pnand %p409, %p410
      %p412 = pneg %p411
      // Predicated region
      $region57: #{tpu_custom_call.1} parent=5 // pred_check
        _
      $region58: #{tpu_custom_call.1} parent=5 // pred_check_branch
        %414 = sbr.rel (%p411) target = $region60
      $region59: #{tpu_custom_call.1} parent=5 // pred_region
        %s415 = ssub.s32 %s29, 1
        %s416 = sand.u32 %s42, 1
        %s417 = scalar_lea.sflag [#allocation3], %s416
        %s418 = sand.u32 %s42, 1
        %s419 = smul.addr %s418, 8
        %s420 = scalar_lea.vmem [#allocation2], %s419
        // Predicated region
        $region61: #{tpu_custom_call.1} parent=59 // pred_check
          %p421 = pneg %p55
        $region62: #{tpu_custom_call.1} parent=59 // pred_check_branch
          %423 = sbr.rel (%p421) target = $region64
        $region63: #{tpu_custom_call.1} parent=59 // pred_region
          %424 = dma.done %s417, 128
        $region64: #{tpu_custom_call.1} parent=59 // pred_fallthru
          _
        // Predicated region
        $region65: #{tpu_custom_call.1} parent=59 // pred_check
          %p425 = pneg %p97
        $region66: #{tpu_custom_call.1} parent=59 // pred_check_branch
          %427 = sbr.rel (%p425) target = $region68
        $region67: #{tpu_custom_call.1} parent=59 // pred_region
          %428 = dma.done [#allocation6], 256
        $region68: #{tpu_custom_call.1} parent=59 // pred_fallthru
          _
        // Predicated region
        $region69: #{tpu_custom_call.1} parent=59 // pred_check
          %p429 = pneg %p244
        $region70: #{tpu_custom_call.1} parent=59 // pred_check_branch
          %431 = sbr.rel (%p429) target = $region72
        $region71: #{tpu_custom_call.1} parent=59 // pred_region
          %432 = dma.done [#allocation6], 768
        $region72: #{tpu_custom_call.1} parent=59 // pred_fallthru
          _
        %s433 = sand.u32 %s42, 1
        %s434 = scalar_lea.sflag [#allocation3], %s433
        %s435 = sand.u32 %s42, 1
        %s436 = smul.addr %s435, 8
        %s437 = scalar_lea.vmem [#allocation2], %s436
        %p438 = pneg %p55
        %p439 = pneg %p52
        %p440 = pneg %p76
        %p441 = pneg %p73
        %p442 = pneg %p97
        %p443 = pneg %p94
        %p444 = pneg %p118
        %p445 = pneg %p115
        %p446 = pneg %p139
        %p447 = pneg %p136
        %p448 = pneg %p160
        %p449 = pneg %p157
        %p450 = pneg %p181
        %p451 = pneg %p178
        %p452 = pneg %p202
        %p453 = pneg %p199
        %p454 = pneg %p223
        %p455 = pneg %p220
        %p456 = pneg %p244
        %p457 = pneg %p241
        %p458 = pneg %p270
        %p459 = pneg %p267
        %s460 = sand.u32 %s257, 1
        %s461 = scalar_lea.sflag [#allocation4], %s460
        %s462 = sand.u32 %s257, 1
        %s463 = smul.addr %s462, 8
        %s464 = scalar_lea.vmem [#allocation8], %s463
        %p465 = pneg %p296
        %p466 = pneg %p293
        %s467 = sand.u32 %s34, 1
        %s468 = scalar_lea.sflag [#allocation10], %s467
        %s469 = sand.u32 %s283, 1
        %s470 = smul.addr %s469, 8
        %s471 = scalar_lea.vmem [#allocation9], %s470
        %p472 = pneg %p322
        %p473 = pneg %p319
        %s474 = sand.u32 %s34, 1
        %s475 = scalar_lea.sflag [#allocation10], %s474
        %s476 = sand.u32 %s309, 1
        %s477 = smul.addr %s476, 8
        %s478 = scalar_lea.vmem [#allocation11], %s477
        %v480 = vld [vmem:[%s420] sm:$0xf]
        %v481 = vld [vmem:[%s420 + $0x4] sm:$0xf]
        %v482 = vunpack.c.l.bf16 %v480
        %v483 = vunpack.c.l.bf16 %v481
        %v484 = vmul.f32 %v482, %v482
        %v485 = vmul.f32 %v483, %v483
        %vm486 = vcmask 261120
        %v487 = vsel %vm486, %v484, 0.0
        %488 = vadd.xlane.f32.xlu0 %v487
        %v489 = vpop.xlane.xlu0 %488
        %v490 = vsel %vm486, %v485, 0.0
        %491 = vadd.xlane.f32.xlu0 %v490
        %v492 = vpop.xlane.xlu0 %491
        %v493 = vrcp.pop 32.0
        %v494 = vmul.f32 %v489, %v493
        %v495 = vmul.f32 %v492, %v493
        %v496 = vadd.f32 %v494, 1e-05
        %v497 = vadd.f32 %v495, 1e-05
        %v498 = vrsqrt.pop %v496
        %v499 = vrsqrt.pop %v497
        %v500 = vmul.f32 %v482, %v498
        %v501 = vmul.f32 %v483, %v499
        %v502 = vld [vmem:[%s1] sm:$0x1]
        %v504 = vlaneseq
        %v505 = vshrl.u32 %v504, 7
        %v506 = vsub.s32 0, %v505
        %v507 = vrot.slane %v502, %v506
        %v509 = vmul.f32 %v500, %v507
        %v510 = vmul.f32 %v501, %v507
        %v511 = vpack.c.bf16 %v510, %v509
        %v512 = vld [vmem:[#allocation5] sm:$0xf]
        %v513 = vld [vmem:[#allocation5 + $0x4] sm:$0xf]
        %v514 = vld [vmem:[#allocation5 + $0x8] sm:$0xf]
        %v515 = vld [vmem:[#allocation5 + $0xc] sm:$0xf]
        %v516 = vld [vmem:[%s3] sm:$0x1]
        %v518 = vlaneseq
        %v519 = vshrl.u32 %v518, 7
        %v520 = vsub.s32 0, %v519
        %v521 = vrot.slane %v516, %v520
        %v527 = vunpack.c.l.b16 %v512
        %v528 = vunpack.c.l.b16 %v513
        %v529 = vunpack.c.l.b16 %v514
        %v530 = vunpack.c.l.b16 %v515
        %v531 = vpack.c.b16 %v528, %v527
        %v532 = vpack.c.b16 %v530, %v529
        %v536 = vsel %vm486, %v511, 0
        %538 = vmatprep.subr.bf16.mxu0 0
        %539 = vmatpush1.bf16.msra.mxu0 0
        %540 = vmatprep.subr.bf16.mxu0 0
        %541 = vmatpush1.bf16.msra.mxu0 0
        %542 = vmatprep.subr.bf16.mxu0 0
        %543 = vmatpush1.bf16.msra.mxu0 0
        %544 = vmatprep.subr.bf16.mxu0 0
        %545 = vmatpush1.bf16.msra.mxu0 0
        %546 = vmatprep.subr.bf16.mxu0 0
        %547 = vmatpush1.bf16.msra.mxu0 0
        %548 = vmatprep.subr.bf16.mxu0 0
        %549 = vmatpush1.bf16.msra.mxu0 0
        %550 = vmatprep.subr.bf16.mxu0 0
        %551 = vmatpush1.bf16.msra.mxu0 %v532
        %552 = vmatprep.subr.bf16.mxu0 0
        %553 = vmatpush1.bf16.msra.mxu0 %v531
        %554 = vmatprep.subr.bf16.mxu0 0
        %555 = vmatpush2.bf16.msra.mxu0 0
        %556 = vmatprep.subr.bf16.mxu0 0
        %557 = vmatpush2.bf16.msra.mxu0 0
        %558 = vmatprep.subr.bf16.mxu0 0
        %559 = vmatpush2.bf16.msra.mxu0 0
        %560 = vmatprep.subr.bf16.mxu0 0
        %561 = vmatpush2.bf16.msra.mxu0 0
        %562 = vmatprep.subr.bf16.mxu0 0
        %563 = vmatpush2.bf16.msra.mxu0 0
        %564 = vmatprep.subr.bf16.mxu0 0
        %565 = vmatpush2.bf16.msra.mxu0 0
        %566 = vmatprep.subr.bf16.mxu0 0
        %567 = vmatpush2.bf16.msra.mxu0 0
        %568 = vmatprep.subr.bf16.mxu0 0
        %569 = vmatpush2.bf16.msra.mxu0 0
        %570 = vmatprep.mubr.bf16.mxu0 0
        %571 = vmatmul.mubr.bf16.gmra.mxu0 %v536
        %v572 = vpop.f32.mrf.mxu0
        %v573 = vadd.f32 %v521, %v572
        %v574 = vpop.f32.mrf.mxu0
        %v575 = vpop.f32.mrf.mxu0
        %v576 = vadd.f32 %v521, %v575
        %v577 = vpop.f32.mrf.mxu0
        %578 = vdwg.mxu0
        %v579 = vld [vmem:[%s8] sm:$0xff]
        %v580 = vld [vmem:[%s8 + $0x8] sm:$0xff]
        %s581 = scalar_lea.vmem %s8, 16
        %v582 = vld [vmem:[%s581] sm:$0xff]
        %v583 = vld [vmem:[%s581 + $0x8] sm:$0xff]
        %s584 = scalar_lea.vmem %s8, 32
        %v585 = vld [vmem:[%s584] sm:$0xff]
        %v586 = vld [vmem:[%s584 + $0x8] sm:$0xff]
        %589 = vrot.lane.b32.xlu0 %v573, 127
        %v590 = vpop.permute.xlu0 %589
        %591 = vrot.lane.b32.xlu0 %v576, 127
        %v592 = vpop.permute.xlu0 %591
        %595 = vrot.lane.b32.xlu0 %v573, 31
        %v596 = vpop.permute.xlu0 %595
        %597 = vrot.lane.b32.xlu0 %v576, 31
        %v598 = vpop.permute.xlu0 %597
        %vm601 = vcmask 252928
        %v602 = vsel %vm601, %v590, %v596
        %v603 = vsel %vm601, %v592, %v598
        %604 = vrot.lane.b32.xlu0 %v573, 97
        %v605 = vpop.permute.xlu0 %604
        %606 = vrot.lane.b32.xlu0 %v576, 97
        %v607 = vpop.permute.xlu0 %606
        %610 = vrot.lane.b32.xlu0 %v573, 1
        %v611 = vpop.permute.xlu0 %610
        %612 = vrot.lane.b32.xlu0 %v576, 1
        %v613 = vpop.permute.xlu0 %612
        %vm616 = vcmask 7168
        %v617 = vsel %vm616, %v605, %v611
        %v618 = vsel %vm616, %v607, %v613
        %v619 = vmul.f32 %v573, %v579
        %v620 = vmul.f32 %v576, %v580
        %v621 = vmul.f32 %v602, %v582
        %v622 = vmul.f32 %v603, %v583
        %v623 = vadd.f32 %v619, %v621
        %v624 = vadd.f32 %v620, %v622
        %v625 = vmul.f32 %v617, %v585
        %v626 = vmul.f32 %v618, %v586
        %v627 = vadd.f32 %v623, %v625
        %v628 = vadd.f32 %v624, %v626
        %v629 = vld [vmem:[%s4] sm:$0xf]
        %v630 = vld [vmem:[%s4 + $0x4] sm:$0xf]
        %v631 = vld [vmem:[%s4 + $0x8] sm:$0xf]
        %v632 = vld [vmem:[%s4 + $0xc] sm:$0xf]
        %v633 = vld [vmem:[%s5] sm:$0x1]
        %v635 = vlaneseq
        %v636 = vshrl.u32 %v635, 7
        %v637 = vsub.s32 0, %v636
        %v638 = vrot.slane %v633, %v637
        %v644 = vunpack.c.l.b16 %v629
        %v645 = vunpack.c.l.b16 %v630
        %v646 = vunpack.c.l.b16 %v631
        %v647 = vunpack.c.l.b16 %v632
        %v648 = vpack.c.b16 %v645, %v644
        %v649 = vpack.c.b16 %v647, %v646
        %652 = vmatprep.subr.bf16.mxu0 0
        %653 = vmatpush1.bf16.msra.mxu0 0
        %654 = vmatprep.subr.bf16.mxu0 0
        %655 = vmatpush1.bf16.msra.mxu0 0
        %656 = vmatprep.subr.bf16.mxu0 0
        %657 = vmatpush1.bf16.msra.mxu0 0
        %658 = vmatprep.subr.bf16.mxu0 0
        %659 = vmatpush1.bf16.msra.mxu0 0
        %660 = vmatprep.subr.bf16.mxu0 0
        %661 = vmatpush1.bf16.msra.mxu0 0
        %662 = vmatprep.subr.bf16.mxu0 0
        %663 = vmatpush1.bf16.msra.mxu0 0
        %664 = vmatprep.subr.bf16.mxu0 0
        %665 = vmatpush1.bf16.msra.mxu0 %v649
        %666 = vmatprep.subr.bf16.mxu0 0
        %667 = vmatpush1.bf16.msra.mxu0 %v648
        %668 = vmatprep.subr.bf16.mxu0 0
        %669 = vmatpush2.bf16.msra.mxu0 0
        %670 = vmatprep.subr.bf16.mxu0 0
        %671 = vmatpush2.bf16.msra.mxu0 0
        %672 = vmatprep.subr.bf16.mxu0 0
        %673 = vmatpush2.bf16.msra.mxu0 0
        %674 = vmatprep.subr.bf16.mxu0 0
        %675 = vmatpush2.bf16.msra.mxu0 0
        %676 = vmatprep.subr.bf16.mxu0 0
        %677 = vmatpush2.bf16.msra.mxu0 0
        %678 = vmatprep.subr.bf16.mxu0 0
        %679 = vmatpush2.bf16.msra.mxu0 0
        %680 = vmatprep.subr.bf16.mxu0 0
        %681 = vmatpush2.bf16.msra.mxu0 0
        %682 = vmatprep.subr.bf16.mxu0 0
        %683 = vmatpush2.bf16.msra.mxu0 0
        %684 = vmatprep.mubr.bf16.mxu0 0
        %685 = vmatmul.mubr.bf16.gmra.mxu0 %v536
        %v686 = vpop.f32.mrf.mxu0
        %v687 = vadd.f32 %v638, %v686
        %v688 = vpop.f32.mrf.mxu0
        %v689 = vpop.f32.mrf.mxu0
        %v690 = vadd.f32 %v638, %v689
        %v691 = vpop.f32.mrf.mxu0
        %692 = vdwg.mxu0
        %v693 = vld [vmem:[#allocation7] sm:$0xff]
        %v694 = vld [vmem:[#allocation7 + $0x8] sm:$0xff]
        %s695 = scalar_lea.vmem [#allocation7], 16
        %v696 = vld [vmem:[%s695] sm:$0xff]
        %v697 = vld [vmem:[%s695 + $0x8] sm:$0xff]
        %s698 = scalar_lea.vmem [#allocation7], 32
        %v699 = vld [vmem:[%s698] sm:$0xff]
        %v700 = vld [vmem:[%s698 + $0x8] sm:$0xff]
        %703 = vrot.lane.b32.xlu0 %v687, 127
        %v704 = vpop.permute.xlu0 %703
        %705 = vrot.lane.b32.xlu0 %v690, 127
        %v706 = vpop.permute.xlu0 %705
        %709 = vrot.lane.b32.xlu0 %v687, 15
        %v710 = vpop.permute.xlu0 %709
        %711 = vrot.lane.b32.xlu0 %v690, 15
        %v712 = vpop.permute.xlu0 %711
        %vm715 = vcmask 121856
        %v716 = vsel %vm715, %v704, %v710
        %v717 = vsel %vm715, %v706, %v712
        %718 = vrot.lane.b32.xlu0 %v687, 113
        %v719 = vpop.permute.xlu0 %718
        %720 = vrot.lane.b32.xlu0 %v690, 113
        %v721 = vpop.permute.xlu0 %720
        %724 = vrot.lane.b32.xlu0 %v687, 1
        %v725 = vpop.permute.xlu0 %724
        %726 = vrot.lane.b32.xlu0 %v690, 1
        %v727 = vpop.permute.xlu0 %726
        %v730 = vsel %vm616, %v719, %v725
        %v731 = vsel %vm616, %v721, %v727
        %v732 = vmul.f32 %v687, %v693
        %v733 = vmul.f32 %v690, %v694
        %v734 = vmul.f32 %v716, %v696
        %v735 = vmul.f32 %v717, %v697
        %v736 = vadd.f32 %v732, %v734
        %v737 = vadd.f32 %v733, %v735
        %v738 = vmul.f32 %v730, %v699
        %v739 = vmul.f32 %v731, %v700
        %v740 = vadd.f32 %v736, %v738
        %v741 = vadd.f32 %v737, %v739
        %v742 = vld [vmem:[%s6] sm:$0xf]
        %v743 = vld [vmem:[%s6 + $0x4] sm:$0xf]
        %v744 = vld [vmem:[%s6 + $0x8] sm:$0xf]
        %v745 = vld [vmem:[%s6 + $0xc] sm:$0xf]
        %v746 = vld [vmem:[%s7] sm:$0x1]
        %v748 = vlaneseq
        %v749 = vshrl.u32 %v748, 7
        %v750 = vsub.s32 0, %v749
        %v751 = vrot.slane %v746, %v750
        %v757 = vunpack.c.l.b16 %v742
        %v758 = vunpack.c.l.b16 %v743
        %v759 = vunpack.c.l.b16 %v744
        %v760 = vunpack.c.l.b16 %v745
        %v761 = vpack.c.b16 %v758, %v757
        %v762 = vpack.c.b16 %v760, %v759
        %765 = vmatprep.subr.bf16.mxu0 0
        %766 = vmatpush1.bf16.msra.mxu0 0
        %767 = vmatprep.subr.bf16.mxu0 0
        %768 = vmatpush1.bf16.msra.mxu0 0
        %769 = vmatprep.subr.bf16.mxu0 0
        %770 = vmatpush1.bf16.msra.mxu0 0
        %771 = vmatprep.subr.bf16.mxu0 0
        %772 = vmatpush1.bf16.msra.mxu0 0
        %773 = vmatprep.subr.bf16.mxu0 0
        %774 = vmatpush1.bf16.msra.mxu0 0
        %775 = vmatprep.subr.bf16.mxu0 0
        %776 = vmatpush1.bf16.msra.mxu0 0
        %777 = vmatprep.subr.bf16.mxu0 0
        %778 = vmatpush1.bf16.msra.mxu0 %v762
        %779 = vmatprep.subr.bf16.mxu0 0
        %780 = vmatpush1.bf16.msra.mxu0 %v761
        %781 = vmatprep.subr.bf16.mxu0 0
        %782 = vmatpush2.bf16.msra.mxu0 0
        %783 = vmatprep.subr.bf16.mxu0 0
        %784 = vmatpush2.bf16.msra.mxu0 0
        %785 = vmatprep.subr.bf16.mxu0 0
        %786 = vmatpush2.bf16.msra.mxu0 0
        %787 = vmatprep.subr.bf16.mxu0 0
        %788 = vmatpush2.bf16.msra.mxu0 0
        %789 = vmatprep.subr.bf16.mxu0 0
        %790 = vmatpush2.bf16.msra.mxu0 0
        %791 = vmatprep.subr.bf16.mxu0 0
        %792 = vmatpush2.bf16.msra.mxu0 0
        %793 = vmatprep.subr.bf16.mxu0 0
        %794 = vmatpush2.bf16.msra.mxu0 0
        %795 = vmatprep.subr.bf16.mxu0 0
        %796 = vmatpush2.bf16.msra.mxu0 0
        %797 = vmatprep.mubr.bf16.mxu0 0
        %798 = vmatmul.mubr.bf16.gmra.mxu0 %v536
        %v799 = vpop.f32.mrf.mxu0
        %v800 = vadd.f32 %v751, %v799
        %v801 = vpop.f32.mrf.mxu0
        %v802 = vpop.f32.mrf.mxu0
        %v803 = vadd.f32 %v751, %v802
        %v804 = vpop.f32.mrf.mxu0
        %805 = vdwg.mxu0
        %v806 = vpack.c.bf16 %v628, %v627
        %v808 = vunpack.c.l.b16 %v806
        %v809 = vunpack.c.h.b16 %v806
        %v810 = vpack.c.b16 %v808, %v808
        %v811 = vpack.c.b16 %v809, %v809
        %vm814 = vcmask 257024
        %815 = vst.msk [vmem:[%s464] sm:$0xf] %vm814, %v810
        %816 = vst.msk [vmem:[%s464 + $0x4] sm:$0xf] %vm814, %v811
        %v817 = vpack.c.bf16 %v741, %v740
        %v819 = vunpack.c.l.b16 %v817
        %v820 = vunpack.c.h.b16 %v817
        %v821 = vpack.c.b16 %v819, %v819
        %v822 = vpack.c.b16 %v820, %v820
        %vm825 = vcmask 125952
        %826 = vst.msk [vmem:[%s471] sm:$0xf] %vm825, %v821
        %827 = vst.msk [vmem:[%s471 + $0x4] sm:$0xf] %vm825, %v822
        %v828 = vpack.c.bf16 %v803, %v800
        %v830 = vunpack.c.l.b16 %v828
        %v831 = vunpack.c.h.b16 %v828
        %v832 = vpack.c.b16 %v830, %v830
        %v833 = vpack.c.b16 %v831, %v831
        %836 = vst.msk [vmem:[%s478] sm:$0xf] %vm825, %v832
        %837 = vst.msk [vmem:[%s478 + $0x4] sm:$0xf] %vm825, %v833
        %s838 = sand.u32 %s257, 1
        %s839 = scalar_lea.sflag [#allocation4], %s838
        %s840 = sand.u32 %s257, 1
        %s841 = smul.addr %s840, 8
        %s842 = scalar_lea.vmem [#allocation8], %s841
        %s843 = sand.u32 %s34, 1
        %s844 = scalar_lea.sflag [#allocation10], %s843
        %s845 = sand.u32 %s283, 1
        %s846 = smul.addr %s845, 8
        %s847 = scalar_lea.vmem [#allocation9], %s846
        %s848 = sand.u32 %s34, 1
        %s849 = scalar_lea.sflag [#allocation10], %s848
        %s850 = sand.u32 %s309, 1
        %s851 = smul.addr %s850, 8
        %s852 = scalar_lea.vmem [#allocation11], %s851
        // Predicated region
        $region73: #{tpu_custom_call.1} parent=59 // pred_check
          %p853 = pneg %p267
        $region74: #{tpu_custom_call.1} parent=59 // pred_check_branch
          %855 = sbr.rel (%p853) target = $region76
        $region75: #{tpu_custom_call.1} parent=59 // pred_region
          %s857 = ssub.s32 128, 128
          %858 = vsyncadd %s839, %s857
          %s859 = smul.addr %s34, 2
          %s860 = smul.addr %s859, 64
          %s861 = scalar_lea.hbm %s10, %s860
          %s862 = sshll.u32 %s842, 4
          %s863 = int_to_ptr.vmem [resolvable:$true] %s862
          %868 = dma.vmem_to_hbm [thread:$0]  %s863, 128, %s861, %s839, 64, 64, 4
        $region76: #{tpu_custom_call.1} parent=59 // pred_fallthru
          _
        // Predicated region
        $region77: #{tpu_custom_call.1} parent=59 // pred_check
          %p869 = pneg %p293
        $region78: #{tpu_custom_call.1} parent=59 // pred_check_branch
          %871 = sbr.rel (%p869) target = $region80
        $region79: #{tpu_custom_call.1} parent=59 // pred_region
          %s873 = ssub.s32 128, 128
          %874 = vsyncadd %s844, %s873
          %s875 = smul.addr %s34, 2
          %s876 = smul.addr %s875, 64
          %s877 = scalar_lea.hbm %s11, %s876
          %s878 = sshll.u32 %s847, 4
          %s879 = int_to_ptr.vmem [resolvable:$true] %s878
          %884 = dma.vmem_to_hbm [thread:$0]  %s879, 128, %s877, %s844, 64, 64, 4
        $region80: #{tpu_custom_call.1} parent=59 // pred_fallthru
          _
        // Predicated region
        $region81: #{tpu_custom_call.1} parent=59 // pred_check
          %p885 = pneg %p319
        $region82: #{tpu_custom_call.1} parent=59 // pred_check_branch
          %887 = sbr.rel (%p885) target = $region84
        $region83: #{tpu_custom_call.1} parent=59 // pred_region
          %s889 = ssub.s32 128, 128
          %890 = vsyncadd %s849, %s889
          %s891 = smul.addr %s34, 2
          %s892 = smul.addr %s891, 64
          %s893 = scalar_lea.hbm %s12, %s892
          %s894 = sshll.u32 %s852, 4
          %s895 = int_to_ptr.vmem [resolvable:$true] %s894
          %900 = dma.vmem_to_hbm [thread:$0]  %s895, 128, %s893, %s849, 64, 64, 4
        $region84: #{tpu_custom_call.1} parent=59 // pred_fallthru
          _
      $region60: #{tpu_custom_call.1} parent=5 // pred_fallthru
        _
      %p901 = scmp.le.s32.totalorder 2, %s29
      // Predicated region
      $region85: #{tpu_custom_call.1} parent=5 // pred_check
        %p902 = pneg %p901
      $region86: #{tpu_custom_call.1} parent=5 // pred_check_branch
        %904 = sbr.rel (%p902) target = $region88
      $region87: #{tpu_custom_call.1} parent=5 // pred_region
        %s905 = ssub.s32 %s29, 2
        // Predicated region
        $region89: #{tpu_custom_call.1} parent=87 // pred_check
          %p906 = pneg %p273
        $region90: #{tpu_custom_call.1} parent=87 // pred_check_branch
          %908 = sbr.rel (%p906) target = $region92
        $region91: #{tpu_custom_call.1} parent=87 // pred_region
          %s909 = sand.u32 %s258, 1
          %s910 = scalar_lea.sflag [#allocation4], %s909
          %s911 = sand.u32 %s258, 1
          %s912 = smul.addr %s911, 8
          %s913 = scalar_lea.vmem [#allocation8], %s912
          %914 = dma.done %s910, 128
        $region92: #{tpu_custom_call.1} parent=87 // pred_fallthru
          _
        // Predicated region
        $region93: #{tpu_custom_call.1} parent=87 // pred_check
          %p915 = pneg %p299
        $region94: #{tpu_custom_call.1} parent=87 // pred_check_branch
          %917 = sbr.rel (%p915) target = $region96
        $region95: #{tpu_custom_call.1} parent=87 // pred_region
          %s918 = sand.u32 %s35, 1
          %s919 = scalar_lea.sflag [#allocation10], %s918
          %s920 = sand.u32 %s284, 1
          %s921 = smul.addr %s920, 8
          %s922 = scalar_lea.vmem [#allocation9], %s921
          %923 = dma.done %s919, 128
        $region96: #{tpu_custom_call.1} parent=87 // pred_fallthru
          _
        // Predicated region
        $region97: #{tpu_custom_call.1} parent=87 // pred_check
          %p924 = pneg %p325
        $region98: #{tpu_custom_call.1} parent=87 // pred_check_branch
          %926 = sbr.rel (%p924) target = $region100
        $region99: #{tpu_custom_call.1} parent=87 // pred_region
          %s927 = sand.u32 %s35, 1
          %s928 = scalar_lea.sflag [#allocation10], %s927
          %s929 = sand.u32 %s310, 1
          %s930 = smul.addr %s929, 8
          %s931 = scalar_lea.vmem [#allocation11], %s930
          %932 = dma.done %s928, 128
        $region100: #{tpu_custom_call.1} parent=87 // pred_fallthru
          _
      $region88: #{tpu_custom_call.1} parent=5 // pred_fallthru
        _
    $region6: #{tpu_custom_call.1} parent=1 // loop_footer
      %s33 = sadd.s32 1, %s29
    $region7: #{tpu_custom_call.1} parent=1 // loop_footer_branch
      %28 = sbr.rel target = $region3
    $region8: #{tpu_custom_call.1} parent=1 // loop_exit
      _
    %933 = vsyncpa [#allocation3], 1
    %s934 = scalar_lea.sflag [#allocation3], 1
    %935 = vsyncpa %s934, 1
    %936 = vsyncpa [#allocation6], 1
    %937 = vsyncpa [#allocation4], 1
    %s938 = scalar_lea.sflag [#allocation4], 1
    %939 = vsyncpa %s938, 1
    %940 = vsyncpa [#allocation10], 1
    %s941 = scalar_lea.sflag [#allocation10], 1
    %942 = vsyncpa %s941, 1

</llo_original>
